<compile_context>
chip_gen: v7x
topology: tpu7x:2x2x1
jax: 0.10.0
libtpu: 0.0.40
codegen_flags: <defaults>
</compile_context>

<pallas_src>
import functools

import jax
import jax.numpy as jnp
from jax.experimental import pallas as pl
from jax.experimental.pallas import tpu as pltpu


def attframe_kernel(x_ref, w1_ref, w2_ref, o_ref, *, inv_hw):
    # x_ref : (TB, C, HWp) f32   TB batch samples (spatial possibly zero-padded)
    # w1_ref: (Cr, C)      f32   first Linear weight (out, in) -- PyTorch layout
    # w2_ref: (1, Cr)      f32   second Linear weight
    # o_ref : (TB, C, HWp) f32

    # ---- global average pool over spatial dims ----
    # Sum over the lane axis (XLU reduce); fold 1/(W*H) later so zero padding of
    # the spatial axis does not change the mean.
    pooled = jnp.sum(x_ref[...], axis=-1)                     # (TB, C)

    # ---- Linear(C -> Cr, bias=False) + ReLU ----
    # Tiny hidden dim: broadcast-multiply + reduce on the VPU; avoids a
    # degenerate MXU matmul shape.
    w1 = w1_ref[...]                                          # (Cr, C)
    h = jnp.sum(pooled[:, None, :] * w1[None, :, :], axis=-1)  # (TB, Cr)
    h = jnp.maximum(h * inv_hw, 0.0)                          # mean fold + ReLU

    # ---- Linear(Cr -> 1, bias=False) ----
    w2 = w2_ref[...]                                          # (1, Cr)
    s = jnp.sum(h * w2, axis=-1, keepdims=True)               # (TB, 1)

    # ---- Hardsigmoid: clamp(x/6 + 0.5, 0, 1) ----
    s = jnp.clip(s * (1.0 / 6.0) + 0.5, 0.0, 1.0)             # (TB, 1)

    # ---- scale the whole feature map by the per-sample scalar ----
    # Re-read x_ref here (instead of reusing a live vreg copy) so the compiler
    # never has to keep the full tile resident across the pool/FC section.
    o_ref[...] = x_ref[...] * s[:, :, None]                   # broadcast (C, HWp)


def _choose_tb(B, C, HWp, itemsize):
    """Samples per grid step: big enough to amortize step overhead, small enough
    to keep double-buffering alive in 64 MiB VMEM and keep the grid >= 2 steps
    (so both v7x TensorCores get work)."""
    bytes_per_sample = C * HWp * itemsize
    vmem_budget = 8 * 1024 * 1024          # per set of 4 buffered copies (2 in + 2 out)
    tb_vmem = max(1, vmem_budget // (4 * bytes_per_sample))
    tb_cap = max(1, B // 2)                # keep >= 2 grid steps when possible
    tb = int(min(tb_vmem, tb_cap, B))
    while B % tb != 0:                     # avoid partial blocks
        tb -= 1
    return tb


def att_frame(x_nchw, w1, w2):
    """x_nchw: (B, C, W, H) float32; w1: (C//r, C); w2: (1, C//r)."""
    B, C, W, H = x_nchw.shape
    HW = W * H
    Cr = w1.shape[0]

    # Lane-dense spatial axis: pad W*H up to a multiple of 128 so the output
    # stores are full-width vst (not masked partial stores). Padding is zeros;
    # the mean's 1/HW is applied with the true HW inside the kernel.
    HWp = ((HW + 127) // 128) * 128
    x_flat = x_nchw.reshape(B, C, HW)
    if HWp != HW:
        x_flat = jnp.pad(x_flat, ((0, 0), (0, 0), (0, HWp - HW)))

    TB = _choose_tb(B, C, HWp, x_flat.dtype.itemsize)
    grid = (B // TB,)

    # VMEM budget: double-buffered input + output blocks + small headroom.
    block_bytes = TB * C * HWp * x_flat.dtype.itemsize
    vmem_limit = min(max(4 * block_bytes + (2 << 20), 16 << 20), 64 << 20)

    kernel = functools.partial(attframe_kernel, inv_hw=1.0 / float(HW))

    out_flat = pl.pallas_call(
        kernel,
        out_shape=jax.ShapeDtypeStruct((B, C, HWp), x_flat.dtype),
        grid_spec=pltpu.PrefetchScalarGridSpec(
            num_scalar_prefetch=0,
            grid=grid,
            in_specs=[
                pl.BlockSpec((TB, C, HWp), lambda b: (b, 0, 0)),
                pl.BlockSpec((Cr, C), lambda b: (0, 0)),
                pl.BlockSpec((1, Cr), lambda b: (0, 0)),
            ],
            out_specs=pl.BlockSpec((TB, C, HWp), lambda b: (b, 0, 0)),
        ),
        compiler_params=pltpu.CompilerParams(
            dimension_semantics=("parallel",),
            vmem_limit_bytes=int(vmem_limit)),
    )(x_flat, w1, w2)

    if HWp != HW:
        out_flat = out_flat[:, :, :HW]
    return out_flat.reshape(B, C, W, H)


def reference_att_frame(x, w1, w2):
    """Pure-JAX reference mirroring the PyTorch forward."""
    y = jnp.mean(x, axis=(2, 3))                     # (B, C)
    h = jnp.maximum(y @ w1.T, 0.0)                   # (B, Cr)
    s = h @ w2.T                                     # (B, 1)
    s = jnp.clip(s / 6.0 + 0.5, 0.0, 1.0)            # hardsigmoid
    return x * s[:, :, None, None]


if __name__ == "__main__":
    # Small shapes consistent with the module: out_channels=32, reduction=16.
    # B=4 so the TB-batched path (TB=2, grid of 2 steps) is exercised.
    B, C, W, H = 4, 32, 16, 16
    reduction = 16
    Cr = C // reduction  # 2

    key = jax.random.PRNGKey(0)
    kx, k1, k2 = jax.random.split(key, 3)

    x = jax.random.normal(kx, (B, C, W, H), dtype=jnp.float32)
    # Deterministic synthetic weights (Linear: (out_features, in_features), no bias).
    w1 = jax.random.normal(k1, (Cr, C), dtype=jnp.float32) * 0.1
    w2 = jax.random.normal(k2, (1, Cr), dtype=jnp.float32) * 0.1

    out = att_frame(x, w1, w2)
    out = jax.block_until_ready(out)

    ref = reference_att_frame(x, w1, w2)
    assert out.shape == x.shape
    assert jnp.allclose(out, ref, atol=1e-5, rtol=1e-5), (
        float(jnp.max(jnp.abs(out - ref))))

    print("KERNEL_OK")
</pallas_src>

<mosaic_0001>
module attributes {stable_mosaic.version = 11 : i64} {
  func.func @attframe_kernel(%arg0: i32, %arg1: memref<2x32x256xf32, #tpu.memory_space<vmem>>, %arg2: memref<2x32xf32, #tpu.memory_space<vmem>>, %arg3: memref<1x2xf32, #tpu.memory_space<vmem>>, %arg4: memref<2x32x256xf32, #tpu.memory_space<vmem>>) attributes {dimension_semantics = [#tpu.dimension_semantics<parallel>], iteration_bounds = array<i64: 2>, scalar_prefetch = 0 : i64, scratch_operands = 0 : i64, tpu.core_type = #tpu.core_type<tc>, window_params = [{transform_indices = @transform_0, window_bounds = array<i64: 2, 32, 256>}, {pipeline_mode = #tpu.pipeline_mode<synchronous>, transform_indices = @transform_1, window_bounds = array<i64: 2, 32>}, {pipeline_mode = #tpu.pipeline_mode<synchronous>, transform_indices = @transform_2, window_bounds = array<i64: 1, 2>}, {transform_indices = @transform_3, window_bounds = array<i64: 2, 32, 256>}]} {
    %c0 = arith.constant 0 : index
    %c0_0 = arith.constant 0 : index
    %c0_1 = arith.constant 0 : index
    %0 = vector.load %arg1[%c0, %c0_0, %c0_1] : memref<2x32x256xf32, #tpu.memory_space<vmem>>, vector<2x32x256xf32>
    %cst = arith.constant dense<0.000000e+00> : vector<2x32xf32>
    %1 = vector.multi_reduction <add>, %0, %cst [2] : vector<2x32x256xf32> to vector<2x32xf32>
    %c0_2 = arith.constant 0 : index
    %c0_3 = arith.constant 0 : index
    %2 = vector.load %arg2[%c0_2, %c0_3] : memref<2x32xf32, #tpu.memory_space<vmem>>, vector<2x32xf32>
    %3 = vector.shape_cast %1 : vector<2x32xf32> to vector<2x1x32xf32>
    %4 = vector.shape_cast %2 : vector<2x32xf32> to vector<1x2x32xf32>
    %5 = vector.broadcast %3 : vector<2x1x32xf32> to vector<2x2x32xf32>
    %6 = vector.broadcast %4 : vector<1x2x32xf32> to vector<2x2x32xf32>
    %7 = arith.mulf %5, %6 : vector<2x2x32xf32>
    %cst_4 = arith.constant dense<0.000000e+00> : vector<2x2xf32>
    %8 = vector.multi_reduction <add>, %7, %cst_4 [2] : vector<2x2x32xf32> to vector<2x2xf32>
    %cst_5 = arith.constant 3.906250e-03 : f32
    %9 = vector.broadcast %cst_5 : f32 to vector<2x2xf32>
    %10 = arith.mulf %8, %9 : vector<2x2xf32>
    %cst_6 = arith.constant 0.000000e+00 : f32
    %11 = vector.broadcast %cst_6 : f32 to vector<2x2xf32>
    %12 = arith.maximumf %10, %11 : vector<2x2xf32>
    %c0_7 = arith.constant 0 : index
    %c0_8 = arith.constant 0 : index
    %13 = vector.load %arg3[%c0_7, %c0_8] : memref<1x2xf32, #tpu.memory_space<vmem>>, vector<1x2xf32>
    %14 = vector.broadcast %13 : vector<1x2xf32> to vector<2x2xf32>
    %15 = arith.mulf %12, %14 : vector<2x2xf32>
    %cst_9 = arith.constant dense<0.000000e+00> : vector<2xf32>
    %16 = vector.multi_reduction <add>, %15, %cst_9 [1] : vector<2x2xf32> to vector<2xf32>
    %17 = vector.shape_cast %16 : vector<2xf32> to vector<2x1xf32>
    %cst_10 = arith.constant 0.166666672 : f32
    %18 = vector.broadcast %cst_10 : f32 to vector<2x1xf32>
    %19 = arith.mulf %17, %18 : vector<2x1xf32>
    %cst_11 = arith.constant 5.000000e-01 : f32
    %20 = vector.broadcast %cst_11 : f32 to vector<2x1xf32>
    %21 = arith.addf %19, %20 : vector<2x1xf32>
    %cst_12 = arith.constant 0.000000e+00 : f32
    %cst_13 = arith.constant 1.000000e+00 : f32
    %22 = vector.broadcast %cst_12 : f32 to vector<2x1xf32>
    %23 = arith.maximumf %22, %21 : vector<2x1xf32>
    %24 = vector.broadcast %cst_13 : f32 to vector<2x1xf32>
    %25 = arith.minimumf %24, %23 : vector<2x1xf32>
    %c0_14 = arith.constant 0 : index
    %c0_15 = arith.constant 0 : index
    %c0_16 = arith.constant 0 : index
    %26 = vector.load %arg1[%c0_14, %c0_15, %c0_16] : memref<2x32x256xf32, #tpu.memory_space<vmem>>, vector<2x32x256xf32>
    %27 = vector.shape_cast %25 : vector<2x1xf32> to vector<2x1x1xf32>
    %28 = vector.broadcast %27 : vector<2x1x1xf32> to vector<2x32x256xf32>
    %29 = arith.mulf %26, %28 : vector<2x32x256xf32>
    %c0_17 = arith.constant 0 : index
    %c0_18 = arith.constant 0 : index
    %c0_19 = arith.constant 0 : index
    %30 = vector.load %arg4[%c0_17, %c0_18, %c0_19] : memref<2x32x256xf32, #tpu.memory_space<vmem>>, vector<2x32x256xf32>
    tpu.vector_store %arg4[%c0_17, %c0_18, %c0_19], %29 {strides = array<i32>} : memref<2x32x256xf32, #tpu.memory_space<vmem>>, vector<2x32x256xf32>,
    return
  }
  func.func @transform_0(%arg0: i32) -> (i32, i32, i32) {
    %c0_i32 = arith.constant 0 : i32
    %c0_i32_0 = arith.constant 0 : i32
    %c0_i32_1 = arith.constant 0 : i32
    return %arg0, %c0_i32, %c0_i32_0 : i32, i32, i32
  }
  func.func @transform_1(%arg0: i32) -> (i32, i32) {
    %c0_i32 = arith.constant 0 : i32
    %c0_i32_0 = arith.constant 0 : i32
    %c0_i32_1 = arith.constant 0 : i32
    return %c0_i32, %c0_i32_0 : i32, i32
  }
  func.func @transform_2(%arg0: i32) -> (i32, i32) {
    %c0_i32 = arith.constant 0 : i32
    %c0_i32_0 = arith.constant 0 : i32
    %c0_i32_1 = arith.constant 0 : i32
    return %c0_i32, %c0_i32_0 : i32, i32
  }
  func.func @transform_3(%arg0: i32) -> (i32, i32, i32) {
    %c0_i32 = arith.constant 0 : i32
    %c0_i32_0 = arith.constant 0 : i32
    %c0_i32_1 = arith.constant 0 : i32
    return %arg0, %c0_i32, %c0_i32_0 : i32, i32, i32
  }
}

</mosaic_0001>

<llo_original>
// kernel: tpu_custom_call.1
$region0: #{tpu_custom_call.1}
  #allocation0 [shape = 'u32[]', space=smem, size = 0x4, offset = 0x4, fixed_abs, tag = 'smem constant byte address 0x4 - core index']
  #allocation1 [shape = 'u32[144,128]{1,0:T(1,128)}', space=vmem, size = 0x12000, scoped, tag = 'internal scratch']
  %s0 = inlined_call_operand.hbm [shape: f32[4,32,256], index: 0, kind: input, shape index: {}]
  %s1 = inlined_call_operand.vmem [shape: f32[2,32], index: 1, kind: input, shape index: {}]
  %s2 = inlined_call_operand.vmem [shape: f32[1,2], index: 2, kind: input, shape index: {}]
  %s3 = inlined_call_operand.hbm [shape: f32[4,32,256], index: 3, kind: output, shape index: {}]
  %s4 = sld [smem:[#allocation0]]
  $region49: #{tpu_custom_call.1} parent=0
    _
  %s6 = ssub.s32 1, %s4
  %s7 = scalar_select 0, %s6, %s4
  $region1: #{tpu_custom_call.1} parent=0
    #allocation2 [shape = 'u8[131072]{0}', space=vmem, size = 0x20000, scoped, tag = 'input window, operand 0']
    #allocation3 [shape = 's32[2]{0}', space=sflag, size = 0x8, scoped, tag = 'scoped memory for tpu_custom_call.1']
    #allocation4 [shape = 's32[2]{0}', space=sflag, size = 0x8, scoped, tag = 'scoped memory for tpu_custom_call.1']
    #allocation5 [shape = 'u8[131072]{0}', space=vmem, size = 0x20000, scoped, tag = 'output window, operand 0']
    %8 = vsyncpa [#allocation3], 0
    %s9 = scalar_lea.sflag [#allocation3], 1
    %10 = vsyncpa %s9, 0
    %11 = vsyncpa [#allocation4], 0
    %s12 = scalar_lea.sflag [#allocation4], 1
    %13 = vsyncpa %s12, 0
    loop: start=0, step=1, limit=4
    $region2: #{tpu_custom_call.1} parent=1 // loop_pre_header
      _
    $region3: #{tpu_custom_call.1} parent=1 // loop_header
      %s15 = sphi 0, %s19
      %p16 = scmp.ge.s32.totalorder %s15, 4
      %s25 = sphi 0, %s27
      %s28 = sphi 0, %s25
      %s29 = sphi 0, %s28
      %s45 = sphi 0, %s29
      %s49 = sphi 0, %s49
      %s51 = sphi 0, %s49
      %s52 = sphi 0, %s51
      %s66 = sphi 0, %s52
      %s70 = sphi 0, %s70
      %s72 = sphi 0, %s70
      %s73 = sphi 0, %s72
      %s87 = sphi 0, %s73
      %s93 = sphi 0, %s95
      %s96 = sphi 0, %s93
      %s97 = sphi 0, %s96
      %s113 = sphi 0, %s97
    $region4: #{tpu_custom_call.1} parent=1 // loop_header_branch
      %18 = sbr.rel (%p16) target = $region8
    $region5: #{tpu_custom_call.1} parent=1 // loop_body
      %s20 = ssub.s32 %s15, 1
      %s21 = ssub.s32 %s15, 2
      %s22 = sadd.s32 %s15, 1
      %s23 = ssub.s32 %s15, %s22
      %p24 = scmp.eq.s32.totalorder %s23, 0
      %s26 = sadd.s32 %s25, 1
      %s27 = scalar_select %p24, %s25, %s26
      %p30 = pneg %p24
      %p31 = scmp.eq.s32.totalorder %s15, 1
      %p32 = por %p30, %p31
      %p33 = scmp.ne.s32.totalorder %s25, %s28
      %p34 = scmp.eq.s32.totalorder %s15, 0
      %p35 = por %p33, %p34
      %p36 = scmp.ne.s32.totalorder %s25, %s28
      %p37 = scmp.eq.s32.totalorder %s20, 1
      %p38 = por %p36, %p37
      %p39 = scmp.ne.s32.totalorder %s28, %s29
      %p40 = scmp.eq.s32.totalorder %s20, 0
      %p41 = por %p39, %p40
      %p42 = scmp.ne.s32.totalorder %s28, %s29
      %p43 = scmp.eq.s32.totalorder %s21, 1
      %p44 = por %p42, %p43
      %p46 = scmp.ne.s32.totalorder %s29, %s45
      %p47 = scmp.eq.s32.totalorder %s21, 0
      %p48 = por %p46, %p47
      %s50 = sadd.s32 %s49, 1
      %p53 = scmp.eq.s32.totalorder %s15, 1
      %p54 = scmp.ne.s32.totalorder %s49, %s51
      %p55 = scmp.eq.s32.totalorder %s15, 0
      %p56 = por %p54, %p55
      %p57 = scmp.ne.s32.totalorder %s49, %s51
      %p58 = scmp.eq.s32.totalorder %s20, 1
      %p59 = por %p57, %p58
      %p60 = scmp.ne.s32.totalorder %s51, %s52
      %p61 = scmp.eq.s32.totalorder %s20, 0
      %p62 = por %p60, %p61
      %p63 = scmp.ne.s32.totalorder %s51, %s52
      %p64 = scmp.eq.s32.totalorder %s21, 1
      %p65 = por %p63, %p64
      %p67 = scmp.ne.s32.totalorder %s52, %s66
      %p68 = scmp.eq.s32.totalorder %s21, 0
      %p69 = por %p67, %p68
      %s71 = sadd.s32 %s70, 1
      %p74 = scmp.eq.s32.totalorder %s15, 1
      %p75 = scmp.ne.s32.totalorder %s70, %s72
      %p76 = scmp.eq.s32.totalorder %s15, 0
      %p77 = por %p75, %p76
      %p78 = scmp.ne.s32.totalorder %s70, %s72
      %p79 = scmp.eq.s32.totalorder %s20, 1
      %p80 = por %p78, %p79
      %p81 = scmp.ne.s32.totalorder %s72, %s73
      %p82 = scmp.eq.s32.totalorder %s20, 0
      %p83 = por %p81, %p82
      %p84 = scmp.ne.s32.totalorder %s72, %s73
      %p85 = scmp.eq.s32.totalorder %s21, 1
      %p86 = por %p84, %p85
      %p88 = scmp.ne.s32.totalorder %s73, %s87
      %p89 = scmp.eq.s32.totalorder %s21, 0
      %p90 = por %p88, %p89
      %s91 = ssub.s32 %s15, %s22
      %p92 = scmp.eq.s32.totalorder %s91, 0
      %s94 = sadd.s32 %s93, 1
      %s95 = scalar_select %p92, %s93, %s94
      %p98 = pneg %p92
      %p99 = scmp.eq.s32.totalorder %s15, 1
      %p100 = por %p98, %p99
      %p101 = scmp.ne.s32.totalorder %s93, %s96
      %p102 = scmp.eq.s32.totalorder %s15, 0
      %p103 = por %p101, %p102
      %p104 = scmp.ne.s32.totalorder %s93, %s96
      %p105 = scmp.eq.s32.totalorder %s20, 1
      %p106 = por %p104, %p105
      %p107 = scmp.ne.s32.totalorder %s96, %s97
      %p108 = scmp.eq.s32.totalorder %s20, 0
      %p109 = por %p107, %p108
      %p110 = scmp.ne.s32.totalorder %s96, %s97
      %p111 = scmp.eq.s32.totalorder %s21, 1
      %p112 = por %p110, %p111
      %p114 = scmp.ne.s32.totalorder %s97, %s113
      %p115 = scmp.eq.s32.totalorder %s21, 0
      %p116 = por %p114, %p115
      %p117 = scmp.le.s32.totalorder 1, %s15
      %p118 = scmp.lt.s32.totalorder %s15, 3
      %p119 = pnand %p117, %p118
      %p120 = pneg %p119
      // Predicated region
      $region9: #{tpu_custom_call.1} parent=5 // pred_check
        _
      $region10: #{tpu_custom_call.1} parent=5 // pred_check_branch
        %122 = sbr.rel (%p119) target = $region12
      $region11: #{tpu_custom_call.1} parent=5 // pred_region
        %s123 = ssub.s32 %s15, 1
        // Predicated region
        $region13: #{tpu_custom_call.1} parent=11 // pred_check
          %p124 = pneg %p62
        $region14: #{tpu_custom_call.1} parent=11 // pred_check_branch
          %126 = sbr.rel (%p124) target = $region16
        $region15: #{tpu_custom_call.1} parent=11 // pred_region
          _
        $region16: #{tpu_custom_call.1} parent=11 // pred_fallthru
          _
        // Predicated region
        $region17: #{tpu_custom_call.1} parent=11 // pred_check
          %p127 = pneg %p83
        $region18: #{tpu_custom_call.1} parent=11 // pred_check_branch
          %129 = sbr.rel (%p127) target = $region20
        $region19: #{tpu_custom_call.1} parent=11 // pred_region
          _
        $region20: #{tpu_custom_call.1} parent=11 // pred_fallthru
          _
      $region12: #{tpu_custom_call.1} parent=5 // pred_fallthru
        _
      %p130 = scmp.lt.s32.totalorder %s15, 2
      // Predicated region
      $region21: #{tpu_custom_call.1} parent=5 // pred_check
        %p131 = pneg %p130
      $region22: #{tpu_custom_call.1} parent=5 // pred_check_branch
        %133 = sbr.rel (%p131) target = $region24
      $region23: #{tpu_custom_call.1} parent=5 // pred_region
        // Predicated region
        $region25: #{tpu_custom_call.1} parent=23 // pred_check
          %p134 = pneg %p35
        $region26: #{tpu_custom_call.1} parent=23 // pred_check_branch
          %136 = sbr.rel (%p134) target = $region28
        $region27: #{tpu_custom_call.1} parent=23 // pred_region
          %s137 = sand.u32 %s25, 1
          %s138 = scalar_lea.sflag [#allocation3], %s137
          %s139 = sand.u32 %s25, 1
          %s140 = smul.addr %s139, 128
          %s141 = scalar_lea.vmem [#allocation2], %s140
          %s142 = smul.u32 2, %s15
          %s144 = ssub.s32 2048, 2048
          %145 = vsyncadd %s138, %s144
          %s146 = smul.addr %s142, 8
          %s147 = smul.addr %s146, 128
          %s148 = scalar_lea.hbm %s0, %s147
          %s149 = sshll.u32 %s141, 4
          %s150 = int_to_ptr.vmem [resolvable:$true] %s149
          %155 = dma.hbm_to_vmem [thread:$0]  %s148, 2048, %s150, %s138, 256, 256, 16
        $region28: #{tpu_custom_call.1} parent=23 // pred_fallthru
          _
      $region24: #{tpu_custom_call.1} parent=5 // pred_fallthru
        _
      %p156 = scmp.le.s32.totalorder 1, %s15
      %p157 = scmp.lt.s32.totalorder %s15, 3
      %p158 = pnand %p156, %p157
      %p159 = pneg %p158
      // Predicated region
      $region29: #{tpu_custom_call.1} parent=5 // pred_check
        _
      $region30: #{tpu_custom_call.1} parent=5 // pred_check_branch
        %161 = sbr.rel (%p158) target = $region32
      $region31: #{tpu_custom_call.1} parent=5 // pred_region
        %s162 = ssub.s32 %s15, 1
        %s163 = sand.u32 %s28, 1
        %s164 = scalar_lea.sflag [#allocation3], %s163
        %s165 = sand.u32 %s28, 1
        %s166 = smul.addr %s165, 128
        %s167 = scalar_lea.vmem [#allocation2], %s166
        // Predicated region
        $region33: #{tpu_custom_call.1} parent=31 // pred_check
          %p168 = pneg %p41
        $region34: #{tpu_custom_call.1} parent=31 // pred_check_branch
          %170 = sbr.rel (%p168) target = $region36
        $region35: #{tpu_custom_call.1} parent=31 // pred_region
          %171 = dma.done %s164, 2048
        $region36: #{tpu_custom_call.1} parent=31 // pred_fallthru
          _
        %s172 = sand.u32 %s28, 1
        %s173 = scalar_lea.sflag [#allocation3], %s172
        %s174 = sand.u32 %s28, 1
        %s175 = smul.addr %s174, 128
        %s176 = scalar_lea.vmem [#allocation2], %s175
        %p177 = pneg %p41
        %p178 = pneg %p38
        %p179 = pneg %p62
        %p180 = pneg %p59
        %p181 = pneg %p83
        %p182 = pneg %p80
        %p183 = pneg %p109
        %p184 = pneg %p106
        %s185 = sand.u32 %s96, 1
        %s186 = scalar_lea.sflag [#allocation4], %s185
        %s187 = sand.u32 %s96, 1
        %s188 = smul.addr %s187, 128
        %s189 = scalar_lea.vmem [#allocation5], %s188
        %s190 = smul.u32 2, %s20
        %s191 = smul.u32 2, %s20
        %v192 = vld [vmem:[%s167] sm:$0xff]
        %v193 = vld [vmem:[%s167 + $0x8] sm:$0xff]
        %v194 = vld [vmem:[%s167 + $0x10] sm:$0xff]
        %v195 = vld [vmem:[%s167 + $0x18] sm:$0xff]
        %v196 = vld [vmem:[%s167 + $0x20] sm:$0xff]
        %v197 = vld [vmem:[%s167 + $0x28] sm:$0xff]
        %v198 = vld [vmem:[%s167 + $0x30] sm:$0xff]
        %v199 = vld [vmem:[%s167 + $0x38] sm:$0xff]
        %v200 = vld [vmem:[%s167 + $0x40] sm:$0xff]
        %v201 = vld [vmem:[%s167 + $0x48] sm:$0xff]
        %v202 = vld [vmem:[%s167 + $0x50] sm:$0xff]
        %v203 = vld [vmem:[%s167 + $0x58] sm:$0xff]
        %v204 = vld [vmem:[%s167 + $0x60] sm:$0xff]
        %v205 = vld [vmem:[%s167 + $0x68] sm:$0xff]
        %v206 = vld [vmem:[%s167 + $0x70] sm:$0xff]
        %v207 = vld [vmem:[%s167 + $0x78] sm:$0xff]
        %v208 = vadd.f32 %v192, %v193
        %209 = vadd.xlane.f32.xlu0 %v208
        %v210 = vpop.xlane.xlu0 %209
        %v211 = vadd.f32 %v194, %v195
        %212 = vadd.xlane.f32.xlu0 %v211
        %v213 = vpop.xlane.xlu0 %212
        %v214 = vadd.f32 %v196, %v197
        %215 = vadd.xlane.f32.xlu0 %v214
        %v216 = vpop.xlane.xlu0 %215
        %v217 = vadd.f32 %v198, %v199
        %218 = vadd.xlane.f32.xlu0 %v217
        %v219 = vpop.xlane.xlu0 %218
        %v220 = vadd.f32 %v200, %v201
        %221 = vadd.xlane.f32.xlu0 %v220
        %v222 = vpop.xlane.xlu0 %221
        %v223 = vadd.f32 %v202, %v203
        %224 = vadd.xlane.f32.xlu0 %v223
        %v225 = vpop.xlane.xlu0 %224
        %v226 = vadd.f32 %v204, %v205
        %227 = vadd.xlane.f32.xlu0 %v226
        %v228 = vpop.xlane.xlu0 %227
        %v229 = vadd.f32 %v206, %v207
        %230 = vadd.xlane.f32.xlu0 %v229
        %v231 = vpop.xlane.xlu0 %230
        %v232 = vld [vmem:[%s1] sm:$0x3]
        %v234 = vlaneseq
        %v235 = vshrl.u32 %v234, 7
        %v236 = vsub.s32 0, %v235
        %v237 = vrot.slane %v232, %v236
        %239 = vbcast.lane.b32.xlu0 %v237, 256
        %v240 = vpop.permute.xlu0 %239
        %s242 = sor.u32 256, 8
        %243 = vbcast.lane.b32.xlu0 %v237, %s242
        %v244 = vpop.permute.xlu0 %243
        %s246 = sor.u32 256, 16
        %247 = vbcast.lane.b32.xlu0 %v237, %s246
        %v248 = vpop.permute.xlu0 %247
        %s250 = sor.u32 256, 24
        %251 = vbcast.lane.b32.xlu0 %v237, %s250
        %v252 = vpop.permute.xlu0 %251
        %v253 = vlaneseq
        %v254 = vshrl.u32 %v253, 7
        %v255 = vsub.s32 1, %v254
        %v256 = vrot.slane %v232, %v255
        %258 = vbcast.lane.b32.xlu0 %v256, 256
        %v259 = vpop.permute.xlu0 %258
        %s261 = sor.u32 256, 8
        %262 = vbcast.lane.b32.xlu0 %v256, %s261
        %v263 = vpop.permute.xlu0 %262
        %s265 = sor.u32 256, 16
        %266 = vbcast.lane.b32.xlu0 %v256, %s265
        %v267 = vpop.permute.xlu0 %266
        %s269 = sor.u32 256, 24
        %270 = vbcast.lane.b32.xlu0 %v256, %s269
        %v271 = vpop.permute.xlu0 %270
        %v280 = vmul.f32 %v210, %v240
        %v281 = vmul.f32 %v213, %v244
        %v282 = vmul.f32 %v216, %v248
        %v283 = vmul.f32 %v219, %v252
        %v284 = vmul.f32 %v210, %v259
        %v285 = vmul.f32 %v213, %v263
        %v286 = vmul.f32 %v216, %v267
        %v287 = vmul.f32 %v219, %v271
        %v288 = vmul.f32 %v222, %v240
        %v289 = vmul.f32 %v225, %v244
        %v290 = vmul.f32 %v228, %v248
        %v291 = vmul.f32 %v231, %v252
        %v292 = vmul.f32 %v222, %v259
        %v293 = vmul.f32 %v225, %v263
        %v294 = vmul.f32 %v228, %v267
        %v295 = vmul.f32 %v231, %v271
        %312 = vset.pattern.permute.xlu0 0
        %313 = vperm.xlu0 %312, %v280
        %v314 = vpop.permute.xlu0 %313
        %315 = vset.pattern.permute.xlu0 0
        %316 = vperm.xlu0 %315, %v281
        %v317 = vpop.permute.xlu0 %316
        %318 = vset.pattern.permute.xlu0 0
        %319 = vperm.xlu0 %318, %v282
        %v320 = vpop.permute.xlu0 %319
        %321 = vset.pattern.permute.xlu0 0
        %322 = vperm.xlu0 %321, %v283
        %v323 = vpop.permute.xlu0 %322
        %324 = vset.pattern.permute.xlu0 0
        %325 = vperm.xlu0 %324, %v284
        %v326 = vpop.permute.xlu0 %325
        %327 = vset.pattern.permute.xlu0 0
        %328 = vperm.xlu0 %327, %v285
        %v329 = vpop.permute.xlu0 %328
        %330 = vset.pattern.permute.xlu0 0
        %331 = vperm.xlu0 %330, %v286
        %v332 = vpop.permute.xlu0 %331
        %333 = vset.pattern.permute.xlu0 0
        %334 = vperm.xlu0 %333, %v287
        %v335 = vpop.permute.xlu0 %334
        %336 = vset.pattern.permute.xlu0 0
        %337 = vperm.xlu0 %336, %v288
        %v338 = vpop.permute.xlu0 %337
        %339 = vset.pattern.permute.xlu0 0
        %340 = vperm.xlu0 %339, %v289
        %v341 = vpop.permute.xlu0 %340
        %342 = vset.pattern.permute.xlu0 0
        %343 = vperm.xlu0 %342, %v290
        %v344 = vpop.permute.xlu0 %343
        %345 = vset.pattern.permute.xlu0 0
        %346 = vperm.xlu0 %345, %v291
        %v347 = vpop.permute.xlu0 %346
        %348 = vset.pattern.permute.xlu0 0
        %349 = vperm.xlu0 %348, %v292
        %v350 = vpop.permute.xlu0 %349
        %351 = vset.pattern.permute.xlu0 0
        %352 = vperm.xlu0 %351, %v293
        %v353 = vpop.permute.xlu0 %352
        %354 = vset.pattern.permute.xlu0 0
        %355 = vperm.xlu0 %354, %v294
        %v356 = vpop.permute.xlu0 %355
        %357 = vset.pattern.permute.xlu0 0
        %358 = vperm.xlu0 %357, %v295
        %v359 = vpop.permute.xlu0 %358
        %v360 = vlaneseq
        %v361 = vand.u32 %v360, 127
        %v362 = vlaneseq
        %v363 = vshrl.u32 %v362, 7
        %v364 = vsub.s32 %v361, %v363
        %v365 = vrot.slane %v314, %v364
        %v366 = vadd.s32 %v361, 4294967288
        %v367 = vlaneseq
        %v368 = vshrl.u32 %v367, 7
        %v369 = vsub.s32 %v366, %v368
        %v370 = vrot.slane %v317, %v369
        %vm371 = vcmask 130112
        %v372 = vsel %vm371, %v370, %v365
        %v373 = vadd.s32 %v361, 4294967280
        %v374 = vlaneseq
        %v375 = vshrl.u32 %v374, 7
        %v376 = vsub.s32 %v373, %v375
        %v377 = vrot.slane %v320, %v376
        %vm378 = vcmask 195712
        %v379 = vsel %vm378, %v377, %v372
        %v380 = vadd.s32 %v361, 4294967272
        %v381 = vlaneseq
        %v382 = vshrl.u32 %v381, 7
        %v383 = vsub.s32 %v380, %v382
        %v384 = vrot.slane %v323, %v383
        %vm385 = vcmask 261312
        %v386 = vsel %vm385, %v384, %v379
        %v387 = vlaneseq
        %v388 = vshrl.u32 %v387, 7
        %v389 = vsub.s32 %v361, %v388
        %v390 = vrot.slane %v326, %v389
        %v391 = vlaneseq
        %v392 = vshrl.u32 %v391, 7
        %v393 = vsub.s32 %v366, %v392
        %v394 = vrot.slane %v329, %v393
        %v395 = vsel %vm371, %v394, %v390
        %v396 = vlaneseq
        %v397 = vshrl.u32 %v396, 7
        %v398 = vsub.s32 %v373, %v397
        %v399 = vrot.slane %v332, %v398
        %v400 = vsel %vm378, %v399, %v395
        %v401 = vlaneseq
        %v402 = vshrl.u32 %v401, 7
        %v403 = vsub.s32 %v380, %v402
        %v404 = vrot.slane %v335, %v403
        %v405 = vsel %vm385, %v404, %v400
        %v406 = vlaneseq
        %v407 = vshrl.u32 %v406, 7
        %v408 = vsub.s32 %v361, %v407
        %v409 = vrot.slane %v338, %v408
        %v410 = vlaneseq
        %v411 = vshrl.u32 %v410, 7
        %v412 = vsub.s32 %v366, %v411
        %v413 = vrot.slane %v341, %v412
        %v414 = vsel %vm371, %v413, %v409
        %v415 = vlaneseq
        %v416 = vshrl.u32 %v415, 7
        %v417 = vsub.s32 %v373, %v416
        %v418 = vrot.slane %v344, %v417
        %v419 = vsel %vm378, %v418, %v414
        %v420 = vlaneseq
        %v421 = vshrl.u32 %v420, 7
        %v422 = vsub.s32 %v380, %v421
        %v423 = vrot.slane %v347, %v422
        %v424 = vsel %vm385, %v423, %v419
        %v425 = vlaneseq
        %v426 = vshrl.u32 %v425, 7
        %v427 = vsub.s32 %v361, %v426
        %v428 = vrot.slane %v350, %v427
        %v429 = vlaneseq
        %v430 = vshrl.u32 %v429, 7
        %v431 = vsub.s32 %v366, %v430
        %v432 = vrot.slane %v353, %v431
        %v433 = vsel %vm371, %v432, %v428
        %v434 = vlaneseq
        %v435 = vshrl.u32 %v434, 7
        %v436 = vsub.s32 %v373, %v435
        %v437 = vrot.slane %v356, %v436
        %v438 = vsel %vm378, %v437, %v433
        %v439 = vlaneseq
        %v440 = vshrl.u32 %v439, 7
        %v441 = vsub.s32 %v380, %v440
        %v442 = vrot.slane %v359, %v441
        %v443 = vsel %vm385, %v442, %v438
        %vm444 = vcmask 1041409
        %v445 = vsel %vm444, %v405, %v386
        %v446 = vsel %vm444, %v443, %v424
        %vm449 = vcmask 254976
        %v450 = vsel %vm449, %v445, 0.0
        %451 = vadd.xlane.f32.xlu0 %v450
        %v452 = vpop.xlane.xlu0 %451
        %v453 = vsel %vm449, %v446, 0.0
        %454 = vadd.xlane.f32.xlu0 %v453
        %v455 = vpop.xlane.xlu0 %454
        %v456 = vmul.f32 %v452, 0.00390625
        %v457 = vmul.f32 %v455, 0.00390625
        %v458 = vmax.f32 %v456, 0.0
        %v459 = vmax.f32 %v457, 0.0
        %v460 = vld [vmem:[%s2] sm:$0x1]
        %v462 = vlaneseq
        %v463 = vshrl.u32 %v462, 7
        %v464 = vsub.s32 0, %v463
        %v465 = vrot.slane %v460, %v464
        %467 = vbcast.lane.b32.xlu0 %v465, 256
        %v468 = vpop.permute.xlu0 %467
        %v470 = vmul.f32 %v458, %v468
        %v471 = vmul.f32 %v459, %v468
        %474 = vset.pattern.permute.xlu0 0
        %475 = vperm.xlu0 %474, %v470
        %v476 = vpop.permute.xlu0 %475
        %477 = vset.pattern.permute.xlu0 0
        %478 = vperm.xlu0 %477, %v471
        %v479 = vpop.permute.xlu0 %478
        %v480 = vlaneseq
        %v481 = vshrl.u32 %v480, 7
        %v482 = vsub.s32 %v361, %v481
        %v483 = vrot.slane %v476, %v482
        %v484 = vlaneseq
        %v485 = vshrl.u32 %v484, 7
        %v486 = vsub.s32 %v361, %v485
        %v487 = vrot.slane %v479, %v486
        %v488 = vsel %vm444, %v487, %v483
        %vm490 = vcmask 9216
        %v491 = vsel %vm490, %v488, 0.0
        %492 = vadd.xlane.f32.xlu0 %v491
        %v493 = vpop.xlane.xlu0 %492
        %v494 = vmul.f32 %v493, 0.16666667
        %v495 = vadd.f32 %v494, 0.5
        %v496 = vmax.f32 %v495, 0.0
        %v497 = vmin.f32 %v496, 1.0
        %v499 = vlaneseq
        %v500 = vshrl.u32 %v499, 7
        %v501 = vsub.s32 0, %v500
        %v502 = vrot.slane %v497, %v501
        %v503 = vlaneseq
        %v504 = vshrl.u32 %v503, 7
        %v505 = vsub.s32 1, %v504
        %v506 = vrot.slane %v497, %v505
        %v509 = vmul.f32 %v192, %v502
        %v510 = vmul.f32 %v193, %v502
        %v511 = vmul.f32 %v194, %v502
        %v512 = vmul.f32 %v195, %v502
        %v513 = vmul.f32 %v196, %v502
        %v514 = vmul.f32 %v197, %v502
        %v515 = vmul.f32 %v198, %v502
        %v516 = vmul.f32 %v199, %v502
        %v517 = vmul.f32 %v200, %v506
        %v518 = vmul.f32 %v201, %v506
        %v519 = vmul.f32 %v202, %v506
        %v520 = vmul.f32 %v203, %v506
        %v521 = vmul.f32 %v204, %v506
        %v522 = vmul.f32 %v205, %v506
        %v523 = vmul.f32 %v206, %v506
        %v524 = vmul.f32 %v207, %v506
        %525 = vst [vmem:[%s189] sm:$0xff] %v509
        %526 = vst [vmem:[%s189 + $0x8] sm:$0xff] %v510
        %527 = vst [vmem:[%s189 + $0x10] sm:$0xff] %v511
        %528 = vst [vmem:[%s189 + $0x18] sm:$0xff] %v512
        %529 = vst [vmem:[%s189 + $0x20] sm:$0xff] %v513
        %530 = vst [vmem:[%s189 + $0x28] sm:$0xff] %v514
        %531 = vst [vmem:[%s189 + $0x30] sm:$0xff] %v515
        %532 = vst [vmem:[%s189 + $0x38] sm:$0xff] %v516
        %533 = vst [vmem:[%s189 + $0x40] sm:$0xff] %v517
        %534 = vst [vmem:[%s189 + $0x48] sm:$0xff] %v518
        %535 = vst [vmem:[%s189 + $0x50] sm:$0xff] %v519
        %536 = vst [vmem:[%s189 + $0x58] sm:$0xff] %v520
        %537 = vst [vmem:[%s189 + $0x60] sm:$0xff] %v521
        %538 = vst [vmem:[%s189 + $0x68] sm:$0xff] %v522
        %539 = vst [vmem:[%s189 + $0x70] sm:$0xff] %v523
        %540 = vst [vmem:[%s189 + $0x78] sm:$0xff] %v524
        %s541 = sand.u32 %s96, 1
        %s542 = scalar_lea.sflag [#allocation4], %s541
        %s543 = sand.u32 %s96, 1
        %s544 = smul.addr %s543, 128
        %s545 = scalar_lea.vmem [#allocation5], %s544
        // Predicated region
        $region37: #{tpu_custom_call.1} parent=31 // pred_check
          %p546 = pneg %p106
        $region38: #{tpu_custom_call.1} parent=31 // pred_check_branch
          %548 = sbr.rel (%p546) target = $region40
        $region39: #{tpu_custom_call.1} parent=31 // pred_region
          %s549 = smul.u32 2, %s20
          %s551 = ssub.s32 2048, 2048
          %552 = vsyncadd %s542, %s551
          %s553 = smul.addr %s549, 8
          %s554 = smul.addr %s553, 128
          %s555 = scalar_lea.hbm %s3, %s554
          %s556 = sshll.u32 %s545, 4
          %s557 = int_to_ptr.vmem [resolvable:$true] %s556
          %562 = dma.vmem_to_hbm [thread:$0]  %s557, 2048, %s555, %s542, 256, 256, 16
        $region40: #{tpu_custom_call.1} parent=31 // pred_fallthru
          _
      $region32: #{tpu_custom_call.1} parent=5 // pred_fallthru
        _
      %p563 = scmp.le.s32.totalorder 2, %s15
      // Predicated region
      $region41: #{tpu_custom_call.1} parent=5 // pred_check
        %p564 = pneg %p563
      $region42: #{tpu_custom_call.1} parent=5 // pred_check_branch
        %566 = sbr.rel (%p564) target = $region44
      $region43: #{tpu_custom_call.1} parent=5 // pred_region
        %s567 = ssub.s32 %s15, 2
        // Predicated region
        $region45: #{tpu_custom_call.1} parent=43 // pred_check
          %p568 = pneg %p112
        $region46: #{tpu_custom_call.1} parent=43 // pred_check_branch
          %570 = sbr.rel (%p568) target = $region48
        $region47: #{tpu_custom_call.1} parent=43 // pred_region
          %s571 = sand.u32 %s97, 1
          %s572 = scalar_lea.sflag [#allocation4], %s571
          %s573 = sand.u32 %s97, 1
          %s574 = smul.addr %s573, 128
          %s575 = scalar_lea.vmem [#allocation5], %s574
          %576 = dma.done %s572, 2048
        $region48: #{tpu_custom_call.1} parent=43 // pred_fallthru
          _
      $region44: #{tpu_custom_call.1} parent=5 // pred_fallthru
        _
    $region6: #{tpu_custom_call.1} parent=1 // loop_footer
      %s19 = sadd.s32 1, %s15
    $region7: #{tpu_custom_call.1} parent=1 // loop_footer_branch
      %14 = sbr.rel target = $region3
    $region8: #{tpu_custom_call.1} parent=1 // loop_exit
      _
    %577 = vsyncpa [#allocation3], 1
    %s578 = scalar_lea.sflag [#allocation3], 1
    %579 = vsyncpa %s578, 1
    %580 = vsyncpa [#allocation4], 1
    %s581 = scalar_lea.sflag [#allocation4], 1
    %582 = vsyncpa %s581, 1

</llo_original>
